<compile_context>
chip_gen: v7x
topology: tpu7x:2x2x1
jax: 0.10.0
libtpu: 0.0.40
codegen_flags: <defaults>
</compile_context>

<pallas_src>
import functools
import math

import jax
import jax.numpy as jnp
from jax.experimental import pallas as pl
from jax.experimental.pallas import tpu as pltpu

_VMEM_LIMIT_BYTES = 64 * 1024 * 1024


# ----------------------------- generic linear kernel -------------------------


def _linear_kernel(x_ref, w_ref, o_ref, *, scale):
    """o = (x @ w) * scale.  w is (in, out) so the contraction dim is leading
    on the RHS (MXU-friendly, no in-kernel weight relayout)."""
    x = x_ref[...].astype(w_ref.dtype)
    y = jnp.dot(x, w_ref[...], preferred_element_type=jnp.float32)
    if scale != 1.0:
        y = y * scale
    o_ref[...] = y.astype(o_ref.dtype)


def _linear(x2d, w, *, out_dtype, scale=1.0, tm=512):
    """Tiled y = x2d @ w (+ optional scale). x2d: (M, Din), w: (Din, Dout)."""
    M, Din = x2d.shape
    Dout = w.shape[1]
    if M <= tm:
        tm = M
        grid_m = 1
    else:
        tm = max(8, (tm // 8) * 8)
        grid_m = pl.cdiv(M, tm)

    kernel = functools.partial(_linear_kernel, scale=scale)
    return pl.pallas_call(
        kernel,
        out_shape=jax.ShapeDtypeStruct((M, Dout), out_dtype),
        grid_spec=pltpu.PrefetchScalarGridSpec(
            num_scalar_prefetch=0,
            grid=(grid_m,),
            in_specs=[
                pl.BlockSpec((tm, Din), lambda i: (i, 0)),
                pl.BlockSpec((Din, Dout), lambda i: (0, 0)),
            ],
            out_specs=pl.BlockSpec((tm, Dout), lambda i: (i, 0)),
        ),
        compiler_params=pltpu.CompilerParams(
            dimension_semantics=("parallel",),
            vmem_limit_bytes=_VMEM_LIMIT_BYTES,
        ),
    )(x2d, w)


# ----------------------------- attention kernel ------------------------------


def _attention_kernel(q_ref, k_ref, v_ref, o_ref, acc_ref, *, approx_recip):
    """One (query-tile, key-tile) step of legacy-softmax attention.

    q_ref: (BH, tq, hd) pre-scaled by 1/sqrt(hd)
    k_ref, v_ref: (BH, tk, hd)
    o_ref: (BH, tq, hd); acc_ref: f32 VMEM accumulator over key tiles.
    """
    kv = pl.program_id(1)

    @pl.when(kv == 0)
    def _init():
        acc_ref[...] = jnp.zeros_like(acc_ref)

    # Stacked per-head scores for this tile pair.
    s = jnp.einsum("bqd,bkd->bqk", q_ref[...], k_ref[...],
                   preferred_element_type=jnp.float32)

    # Legacy torch softmax (dim=None on 3-D => dim=0): normalize over the
    # batch*heads axis at every (q, k) position, so each key tile is
    # independently normalized -- no cross-k carry needed.
    m = jnp.max(s, axis=0, keepdims=True)
    e = jnp.exp(s - m)
    denom = jnp.sum(e, axis=0, keepdims=True)
    inv = pl.reciprocal(denom, approx=approx_recip)
    # TODO(synk): training-mode dropout on the attention weights not applied.
    attn = (e * inv).astype(v_ref.dtype)

    acc_ref[...] += jnp.einsum("bqk,bkd->bqd", attn, v_ref[...],
                               preferred_element_type=jnp.float32)

    @pl.when(kv == pl.num_programs(1) - 1)
    def _finalize():
        o_ref[...] = acc_ref[...].astype(o_ref.dtype)


def _pick_q_tile(Sq, tq_default):
    """8-aligned query tile; prefer >=2 tiles when Sq allows (megacore)."""
    if Sq < 16:
        return Sq
    half = -(-Sq // 2)                       # ceil(Sq / 2)
    t = ((half + 7) // 8) * 8
    return max(8, min(((tq_default + 7) // 8) * 8, t))


def _pick_k_tile(Sk, tk_default):
    """Key tile must divide Sk exactly (padded key columns would corrupt the
    attn @ v accumulation); fall back to the full extent otherwise."""
    if Sk <= tk_default or Sk % 8 != 0:
        return Sk
    t = (min(tk_default, Sk) // 8) * 8
    while t >= 8:
        if Sk % t == 0:
            return t
        t -= 8
    return Sk


def _attention(qh, kh, vh, *, tq, tk, approx_recip):
    BH, Sq, hd = qh.shape
    Sk = kh.shape[1]
    tq_ = _pick_q_tile(Sq, tq)
    tk_ = _pick_k_tile(Sk, tk)
    grid = (pl.cdiv(Sq, tq_), Sk // tk_)

    kernel = functools.partial(_attention_kernel, approx_recip=approx_recip)
    return pl.pallas_call(
        kernel,
        out_shape=jax.ShapeDtypeStruct((BH, Sq, hd), qh.dtype),
        grid_spec=pltpu.PrefetchScalarGridSpec(
            num_scalar_prefetch=0,
            grid=grid,
            in_specs=[
                pl.BlockSpec((BH, tq_, hd), lambda i, j: (0, i, 0)),
                pl.BlockSpec((BH, tk_, hd), lambda i, j: (0, j, 0)),
                pl.BlockSpec((BH, tk_, hd), lambda i, j: (0, j, 0)),
            ],
            out_specs=pl.BlockSpec((BH, tq_, hd), lambda i, j: (0, i, 0)),
            scratch_shapes=[pltpu.VMEM((BH, tq_, hd), jnp.float32)],
        ),
        compiler_params=pltpu.CompilerParams(
            dimension_semantics=("parallel", "arbitrary"),
            vmem_limit_bytes=_VMEM_LIMIT_BYTES,
        ),
    )(qh, kh, vh)


# ------------------------------- wrapper --------------------------------------


def _split_heads(x, B, S, num_heads):
    """(B, S, H) -> (B*num_heads, S, hd)  (== PyTorch transpose_qkv)."""
    H = x.shape[-1]
    hd = H // num_heads
    x = x.reshape(B, S, num_heads, hd).transpose(0, 2, 1, 3)
    return x.reshape(B * num_heads, S, hd)


def _merge_heads(x, B, num_heads):
    """(B*num_heads, S, hd) -> (B*S, H)  (== PyTorch transpose_output, 2-D slab)."""
    BH, S, hd = x.shape
    x = x.reshape(B, num_heads, S, hd).transpose(0, 2, 1, 3)
    return x.reshape(B * S, num_heads * hd)


def multi_head_attention(params, queries, keys, values, num_heads, *,
                         use_bf16_mxu=True, tq=256, tk=512):
    """Forward pass matching MultiHeadAttention.forward (eval mode)."""
    B, Sq, Dq = queries.shape
    _, Sk, Dk = keys.shape
    Dv = values.shape[2]
    H = params["W_q"].shape[0]
    assert H % num_heads == 0
    hd = H // num_heads

    cdt = jnp.bfloat16 if use_bf16_mxu else jnp.float32

    # One-time host-side relayout: PyTorch Linear stores (out, in); pass the
    # MXU-friendly (in, out) layout and pre-cast to the compute dtype.
    wq_t = params["W_q"].T.astype(cdt)
    wk_t = params["W_k"].T.astype(cdt)
    wv_t = params["W_v"].T.astype(cdt)
    wo_t = params["W_o"].T.astype(cdt)

    # Projections -- done once, not per query tile.  q is pre-scaled so the
    # score matmul needs no post-scale over B*H*Sq*Sk elements.
    scale = 1.0 / math.sqrt(hd)
    q = _linear(queries.reshape(B * Sq, Dq), wq_t, out_dtype=cdt, scale=scale)
    k = _linear(keys.reshape(B * Sk, Dk), wk_t, out_dtype=cdt)
    v = _linear(values.reshape(B * Sk, Dv), wv_t, out_dtype=cdt)

    # Head split (layout plumbing, one-time, outside the kernels).
    qh = _split_heads(q.reshape(B, Sq, H), B, Sq, num_heads)
    kh = _split_heads(k.reshape(B, Sk, H), B, Sk, num_heads)
    vh = _split_heads(v.reshape(B, Sk, H), B, Sk, num_heads)

    # Attention with legacy axis-0 softmax, tiled over (q, k).
    attn_out = _attention(qh, kh, vh, tq=tq, tk=tk, approx_recip=use_bf16_mxu)

    # Single K=H output projection on a lane-dense (B*Sq, H) slab.
    out_concat = _merge_heads(attn_out, B, num_heads)
    out = _linear(out_concat, wo_t, out_dtype=jnp.float32)
    return out.reshape(B, Sq, H)


# ------------------------------ init & reference ------------------------------


def init_params(key, key_size, query_size, value_size, num_hiddens):
    """Deterministic init mirroring torch.nn.Linear(bias=False) weight shapes."""
    k1, k2, k3, k4 = jax.random.split(key, 4)

    def w(k, out_f, in_f):
        bound = 1.0 / math.sqrt(in_f)
        return jax.random.uniform(k, (out_f, in_f), jnp.float32, -bound, bound)

    return {
        "W_q": w(k1, num_hiddens, query_size),
        "W_k": w(k2, num_hiddens, key_size),
        "W_v": w(k3, num_hiddens, value_size),
        "W_o": w(k4, num_hiddens, num_hiddens),
    }


def _transpose_qkv(x, num_heads):
    b, s, h = x.shape
    x = x.reshape(b, s, num_heads, h // num_heads).transpose(0, 2, 1, 3)
    return x.reshape(b * num_heads, s, h // num_heads)


def _transpose_output(x, num_heads):
    bh, s, d = x.shape
    x = x.reshape(bh // num_heads, num_heads, s, d).transpose(0, 2, 1, 3)
    return x.reshape(x.shape[0], s, num_heads * d)


def reference(params, queries, keys, values, num_heads):
    """Pure-JAX reference reproducing the PyTorch forward (eval mode)."""
    q = _transpose_qkv(queries @ params["W_q"].T, num_heads)
    k = _transpose_qkv(keys @ params["W_k"].T, num_heads)
    v = _transpose_qkv(values @ params["W_v"].T, num_heads)
    d = q.shape[-1]
    scores = jnp.einsum("bqd,bkd->bqk", q, k) / math.sqrt(d)
    attn = jax.nn.softmax(scores, axis=0)  # legacy torch softmax dim for 3-D
    out = jnp.einsum("bqk,bkd->bqd", attn, v)
    out = _transpose_output(out, num_heads)
    return out @ params["W_o"].T


# ---------------------------------- main ---------------------------------------

if __name__ == "__main__":
    B, S = 2, 8
    query_size = key_size = value_size = 32
    num_hiddens = 32
    num_heads = 4

    root = jax.random.PRNGKey(0)
    kq, kk, kv, kp = jax.random.split(root, 4)
    queries = jax.random.normal(kq, (B, S, query_size), jnp.float32)
    keys = jax.random.normal(kk, (B, S, key_size), jnp.float32)
    values = jax.random.normal(kv, (B, S, value_size), jnp.float32)

    params = init_params(kp, key_size, query_size, value_size, num_hiddens)
    ref = reference(params, queries, keys, values, num_heads)

    # Default path: bf16 MXU inputs, f32 accumulation / softmax.
    out = multi_head_attention(params, queries, keys, values, num_heads)
    out = jax.block_until_ready(out)
    assert out.shape == (B, S, num_hiddens)
    assert jnp.allclose(out, ref, atol=5e-2, rtol=5e-2), float(
        jnp.max(jnp.abs(out - ref)))

    # Strict-precision path (f32 MXU inputs, exact reciprocal).
    out_f32 = multi_head_attention(params, queries, keys, values, num_heads,
                                   use_bf16_mxu=False)
    out_f32 = jax.block_until_ready(out_f32)
    assert jnp.allclose(out_f32, ref, atol=2e-3, rtol=2e-3), float(
        jnp.max(jnp.abs(out_f32 - ref)))

    print("KERNEL_OK")
</pallas_src>

<mosaic_0001>
module attributes {stable_mosaic.version = 11 : i64} {
  func.func @_linear_kernel(%arg0: i32, %arg1: memref<16x32xf32, #tpu.memory_space<vmem>>, %arg2: memref<32x32xbf16, #tpu.memory_space<vmem>>, %arg3: memref<16x32xbf16, #tpu.memory_space<vmem>>) attributes {dimension_semantics = [#tpu.dimension_semantics<parallel>], iteration_bounds = array<i64: 1>, scalar_prefetch = 0 : i64, scratch_operands = 0 : i64, tpu.core_type = #tpu.core_type<tc>, window_params = [{transform_indices = @transform_0, window_bounds = array<i64: 16, 32>}, {pipeline_mode = #tpu.pipeline_mode<synchronous>, transform_indices = @transform_1, window_bounds = array<i64: 32, 32>}, {transform_indices = @transform_2, window_bounds = array<i64: 16, 32>}]} {
    %c0 = arith.constant 0 : index
    %c0_0 = arith.constant 0 : index
    %0 = vector.load %arg1[%c0, %c0_0] : memref<16x32xf32, #tpu.memory_space<vmem>>, vector<16x32xf32>
    %1 = arith.truncf %0 : vector<16x32xf32> to vector<16x32xbf16>
    %c0_1 = arith.constant 0 : index
    %c0_2 = arith.constant 0 : index
    %2 = vector.load %arg2[%c0_1, %c0_2] : memref<32x32xbf16, #tpu.memory_space<vmem>>, vector<32x32xbf16>
    %cst = arith.constant dense<0.000000e+00> : vector<16x32xf32>
    %3 = tpu.matmul %1, %2, %cst {dimension_numbers = #tpu.dot_dimension_numbers<[1], [0], [0], [1], [0, 0, 1, 1], [], []>} : vector<16x32xbf16>, vector<32x32xbf16>, vector<16x32xf32> -> vector<16x32xf32>
    %cst_3 = arith.constant 0.353553385 : f32
    %4 = vector.broadcast %cst_3 : f32 to vector<16x32xf32>
    %5 = arith.mulf %3, %4 : vector<16x32xf32>
    %6 = arith.truncf %5 : vector<16x32xf32> to vector<16x32xbf16>
    %c0_4 = arith.constant 0 : index
    %c0_5 = arith.constant 0 : index
    %7 = vector.load %arg3[%c0_4, %c0_5] : memref<16x32xbf16, #tpu.memory_space<vmem>>, vector<16x32xbf16>
    tpu.vector_store %arg3[%c0_4, %c0_5], %6 {strides = array<i32>} : memref<16x32xbf16, #tpu.memory_space<vmem>>, vector<16x32xbf16>,
    return
  }
  func.func @transform_0(%arg0: i32) -> (i32, i32) {
    %c0_i32 = arith.constant 0 : i32
    %c0_i32_0 = arith.constant 0 : i32
    return %arg0, %c0_i32 : i32, i32
  }
  func.func @transform_1(%arg0: i32) -> (i32, i32) {
    %c0_i32 = arith.constant 0 : i32
    %c0_i32_0 = arith.constant 0 : i32
    %c0_i32_1 = arith.constant 0 : i32
    return %c0_i32, %c0_i32_0 : i32, i32
  }
  func.func @transform_2(%arg0: i32) -> (i32, i32) {
    %c0_i32 = arith.constant 0 : i32
    %c0_i32_0 = arith.constant 0 : i32
    return %arg0, %c0_i32 : i32, i32
  }
}

</mosaic_0001>

<llo_original>
// kernel: tpu_custom_call.1
$region0: #{tpu_custom_call.1}
  #allocation0 [shape = 'u32[]', space=smem, size = 0x4, offset = 0x4, fixed_abs, tag = 'smem constant byte address 0x4 - core index']
  #allocation1 [shape = 'u32[144,128]{1,0:T(1,128)}', space=vmem, size = 0x12000, scoped, tag = 'internal scratch']
  %s0 = inlined_call_operand.hbm [shape: f32[16,32], index: 0, kind: input, shape index: {}]
  %s1 = inlined_call_operand.hbm [shape: bf16[32,32], index: 1, kind: input, shape index: {}]
  %s2 = inlined_call_operand.hbm [shape: bf16[16,32], index: 2, kind: output, shape index: {}]
  %s3 = sld [smem:[#allocation0]]
  $region26: #{tpu_custom_call.1} parent=0
    _
  %s5 = ssub.s32 1, %s3
  %s6 = scalar_select 0, %s5, %s3
  $region1: #{tpu_custom_call.1} parent=0
    #allocation2 [shape = 'u8[8192]{0}', space=vmem, size = 0x2000, scoped, tag = 'input window, operand 0, single buffered']
    #allocation3 [shape = 's32[1]{0}', space=sflag, size = 0x4, scoped, tag = 'scoped memory for tpu_custom_call.1']
    #allocation4 [shape = 's32[1]{0}', space=sflag, size = 0x4, scoped, tag = 'scoped memory for tpu_custom_call.1']
    #allocation5 [shape = 'u8[8192]{0}', space=vmem, size = 0x2000, scoped, tag = 'input window, operand 1, single buffered']
    #allocation6 [shape = 's32[1]{0}', space=sflag, size = 0x4, scoped, tag = 'scoped memory for tpu_custom_call.1']
    #allocation7 [shape = 'u8[4096]{0}', space=vmem, size = 0x1000, scoped, tag = 'output window, operand 0, single buffered']
    %7 = vsyncpa [#allocation3], 0
    %8 = vsyncpa [#allocation6], 0
    %9 = vsyncpa [#allocation4], 0
    // Predicated region
    $region2: #{tpu_custom_call.1} parent=1 // pred_check
      _
    $region3: #{tpu_custom_call.1} parent=1 // pred_check_branch
      %11 = sbr.rel (0) target = $region5
    $region4: #{tpu_custom_call.1} parent=1 // pred_region
      %s13 = ssub.s32 256, 256
      %14 = vsyncadd [#allocation3], %s13
      %s15 = sshll.u32 [#allocation2], 4
      %s16 = int_to_ptr.vmem [resolvable:$true] %s15
      %21 = dma.hbm_to_vmem [thread:$0]  %s0, 256, %s16, [#allocation3], 128, 128, 8
    $region5: #{tpu_custom_call.1} parent=1 // pred_fallthru
      _
    // Predicated region
    $region6: #{tpu_custom_call.1} parent=1 // pred_check
      _
    $region7: #{tpu_custom_call.1} parent=1 // pred_check_branch
      %23 = sbr.rel (0) target = $region9
    $region8: #{tpu_custom_call.1} parent=1 // pred_region
      %s25 = ssub.s32 256, 256
      %26 = vsyncadd [#allocation6], %s25
      %s27 = sshll.u32 [#allocation5], 4
      %s28 = int_to_ptr.vmem [resolvable:$true] %s27
      %33 = dma.hbm_to_vmem [thread:$0]  %s1, 256, %s28, [#allocation6], 64, 64, 4
    $region9: #{tpu_custom_call.1} parent=1 // pred_fallthru
      _
    // Predicated region
    $region10: #{tpu_custom_call.1} parent=1 // pred_check
      _
    $region11: #{tpu_custom_call.1} parent=1 // pred_check_branch
      %35 = sbr.rel (0) target = $region13
    $region12: #{tpu_custom_call.1} parent=1 // pred_region
      %36 = dma.done [#allocation3], 256
    $region13: #{tpu_custom_call.1} parent=1 // pred_fallthru
      _
    // Predicated region
    $region14: #{tpu_custom_call.1} parent=1 // pred_check
      _
    $region15: #{tpu_custom_call.1} parent=1 // pred_check_branch
      %38 = sbr.rel (0) target = $region17
    $region16: #{tpu_custom_call.1} parent=1 // pred_region
      %39 = dma.done [#allocation6], 256
    $region17: #{tpu_custom_call.1} parent=1 // pred_fallthru
      _
    %v41 = vld [vmem:[#allocation2] sm:$0xff]
    %v42 = vld [vmem:[#allocation2 + $0x8] sm:$0xff]
    %v43 = vpack.c.bf16 %v42, %v41
    %v44 = vld [vmem:[#allocation5] sm:$0xf]
    %v45 = vld [vmem:[#allocation5 + $0x4] sm:$0xf]
    %v46 = vld [vmem:[#allocation5 + $0x8] sm:$0xf]
    %v47 = vld [vmem:[#allocation5 + $0xc] sm:$0xf]
    %v52 = vunpack.c.l.b16 %v44
    %v53 = vunpack.c.l.b16 %v45
    %v54 = vunpack.c.l.b16 %v46
    %v55 = vunpack.c.l.b16 %v47
    %v56 = vpack.c.b16 %v53, %v52
    %v57 = vpack.c.b16 %v55, %v54
    %vm60 = vcmask 261120
    %v62 = vsel %vm60, %v43, 0
    %64 = vmatprep.subr.bf16.mxu0 0
    %65 = vmatpush1.bf16.msra.mxu0 %v56
    %66 = vmatprep.subr.bf16.mxu0 0
    %67 = vmatpush1.bf16.msra.mxu0 %v57
    %68 = vmatprep.subr.bf16.mxu0 0
    %69 = vmatpush1.bf16.msra.mxu0 0
    %70 = vmatprep.subr.bf16.mxu0 0
    %71 = vmatpush1.bf16.msra.mxu0 0
    %72 = vmatprep.subr.bf16.mxu0 0
    %73 = vmatpush1.bf16.msra.mxu0 0
    %74 = vmatprep.subr.bf16.mxu0 0
    %75 = vmatpush1.bf16.msra.mxu0 0
    %76 = vmatprep.subr.bf16.mxu0 0
    %77 = vmatpush1.bf16.msra.mxu0 0
    %78 = vmatprep.subr.bf16.mxu0 0
    %79 = vmatpush1.bf16.msra.mxu0 0
    %80 = vmatprep.subr.bf16.mxu0 0
    %81 = vmatpush1.bf16.msra.mxu0 0
    %82 = vmatprep.subr.bf16.mxu0 0
    %83 = vmatpush1.bf16.msra.mxu0 0
    %84 = vmatprep.subr.bf16.mxu0 0
    %85 = vmatpush1.bf16.msra.mxu0 0
    %86 = vmatprep.subr.bf16.mxu0 0
    %87 = vmatpush1.bf16.msra.mxu0 0
    %88 = vmatprep.subr.bf16.mxu0 0
    %89 = vmatpush1.bf16.msra.mxu0 0
    %90 = vmatprep.subr.bf16.mxu0 0
    %91 = vmatpush1.bf16.msra.mxu0 0
    %92 = vmatprep.subr.bf16.mxu0 0
    %93 = vmatpush1.bf16.msra.mxu0 0
    %94 = vmatprep.subr.bf16.mxu0 0
    %95 = vmatpush1.bf16.msra.mxu0 0
    %96 = vmatprep.mubr.bf16.mxu0 0
    %97 = vmatmul.mubr.bf16.gmra.mrb[0].mxu0 %v62
    %v98 = vpop.f32.mrb[0].mxu0
    %v99 = vadd.f32 0.0, %v98
    %v100 = vpop.f32.mrb[0].mxu0
    %v101 = vpop.f32.mrb[0].mxu0
    %v102 = vadd.f32 0.0, %v101
    %v103 = vpop.f32.mrb[0].mxu0
    %104 = vdwg.mxu0
    %v105 = vmul.f32 %v99, 0.35355338
    %v106 = vmul.f32 %v102, 0.35355338
    %v107 = vpack.c.bf16 %v106, %v105
    %v109 = vunpack.c.l.b16 %v107
    %v110 = vunpack.c.h.b16 %v107
    %v111 = vpack.c.b16 %v109, %v109
    %v112 = vpack.c.b16 %v110, %v110
    %vm115 = vcmask 257024
    %116 = vst.msk [vmem:[#allocation7] sm:$0xf] %vm115, %v111
    %117 = vst.msk [vmem:[#allocation7 + $0x4] sm:$0xf] %vm115, %v112
    // Predicated region
    $region18: #{tpu_custom_call.1} parent=1 // pred_check
      _
    $region19: #{tpu_custom_call.1} parent=1 // pred_check_branch
      %119 = sbr.rel (0) target = $region21
    $region20: #{tpu_custom_call.1} parent=1 // pred_region
      %s121 = ssub.s32 128, 128
      %122 = vsyncadd [#allocation4], %s121
      %s123 = sshll.u32 [#allocation7], 4
      %s124 = int_to_ptr.vmem [resolvable:$true] %s123
      %129 = dma.vmem_to_hbm [thread:$0]  %s124, 128, %s2, [#allocation4], 64, 64, 4
    $region21: #{tpu_custom_call.1} parent=1 // pred_fallthru
      _
    // Predicated region
    $region22: #{tpu_custom_call.1} parent=1 // pred_check
      _
    $region23: #{tpu_custom_call.1} parent=1 // pred_check_branch
      %131 = sbr.rel (0) target = $region25
    $region24: #{tpu_custom_call.1} parent=1 // pred_region
      %132 = dma.done [#allocation4], 128
    $region25: #{tpu_custom_call.1} parent=1 // pred_fallthru
      _
    %133 = vsyncpa [#allocation3], 1
    %134 = vsyncpa [#allocation6], 1
    %135 = vsyncpa [#allocation4], 1

</llo_original>
